<compile_context>
chip_gen: v7x
topology: tpu7x:2x2x1
jax: 0.10.0
libtpu: 0.0.40
codegen_flags: <defaults>
</compile_context>

<pallas_src>
import functools

import jax
import jax.numpy as jnp
from jax.experimental import pallas as pl
from jax.experimental.pallas import tpu as pltpu

HIDDEN = 64          # fixed hidden width of the PyTorch module
A_PAD = 128          # final layer padded to a full lane width
NEG_BIG = -1e30      # pad-bias so padded logits vanish under softmax
DEFAULT_TILE_B = 256 # batch rows per grid step (256 fills the v6e/v7x MXU)


def _round_up(n, m):
    return (n + m - 1) // m * m


# --------------------------------------------------------------------------
# Kernel
# --------------------------------------------------------------------------
def ppo_policy_kernel(x_ref,
                      w1_ref, b1_ref, w2_ref, b2_ref, w3_ref, b3_ref,
                      w4_ref, b4_ref, w5_ref, b5_ref, w6_ref, b6_ref,
                      probs_ref, log_probs_ref):
    def linear_relu(h_bf16, w_ref, b_ref):
        acc = jnp.dot(h_bf16, w_ref[...],
                      preferred_element_type=jnp.float32) + b_ref[...]
        return jnp.maximum(acc, 0.0).astype(jnp.bfloat16)

    h = x_ref[...].astype(jnp.bfloat16)
    h = linear_relu(h, w1_ref, b1_ref)        # fc1 + relu
    h = linear_relu(h, w2_ref, b2_ref)        # fc2 + relu
    h = linear_relu(h, w3_ref, b3_ref)        # fc3 + relu
    h = linear_relu(h, w4_ref, b4_ref)        # fc4 + relu
    h = linear_relu(h, w5_ref, b5_ref)        # fc5 + relu
    logits = jnp.dot(h, w6_ref[...],          # fc6 (padded to A_PAD lanes)
                     preferred_element_type=jnp.float32) + b6_ref[...]

    # Numerically stable softmax / log_softmax over the last axis (f32).
    m = jnp.max(logits, axis=1, keepdims=True)
    z = logits - m
    e = jnp.exp(z)
    denom = jnp.sum(e, axis=1, keepdims=True)

    # EUP approximate reciprocal + 2 Newton steps -> ~f32-exact 1/denom.
    inv = pl.reciprocal(denom, approx=True)
    inv = inv * (2.0 - denom * inv)
    inv = inv * (2.0 - denom * inv)

    probs_ref[...] = e * inv                  # full 128-lane unmasked store
    log_probs_ref[...] = z - jnp.log(denom)   # full 128-lane unmasked store


# --------------------------------------------------------------------------
# Wrapper
# --------------------------------------------------------------------------
def _prepare_params(params, action_dim):
    """bf16 weights (MXU native), f32 biases; pad fc6 out to A_PAD lanes."""
    flat = []
    for i in range(1, 6):
        flat.append(params[f"w{i}"].astype(jnp.bfloat16))
        flat.append(params[f"b{i}"].astype(jnp.float32))
    w6 = params["w6"].astype(jnp.bfloat16)
    b6 = params["b6"].astype(jnp.float32)
    w6p = jnp.zeros((HIDDEN, A_PAD), jnp.bfloat16).at[:, :action_dim].set(w6)
    b6p = jnp.full((1, A_PAD), NEG_BIG, jnp.float32).at[:, :action_dim].set(b6)
    flat.append(w6p)
    flat.append(b6p)
    return flat


@functools.partial(jax.jit, static_argnames=("tile_b",))
def deep_ppo_policy_forward(x, params, *, tile_b=DEFAULT_TILE_B):
    B, state_dim = x.shape
    action_dim = params["w6"].shape[1]

    tile_b = _round_up(tile_b, 8)
    TILE_B = min(tile_b, _round_up(B, 8))
    B_pad = _round_up(B, TILE_B)
    if B_pad != B:
        x = jnp.pad(x, ((0, B_pad - B), (0, 0)))
    n_tiles = B_pad // TILE_B

    flat = _prepare_params(params, action_dim)

    in_specs = [pl.BlockSpec((TILE_B, state_dim), lambda i: (i, 0))]
    for p in flat:  # weights / biases: constant index_map -> VMEM-resident
        in_specs.append(pl.BlockSpec(p.shape, lambda i: (0, 0)))
    out_specs = (pl.BlockSpec((TILE_B, A_PAD), lambda i: (i, 0)),
                 pl.BlockSpec((TILE_B, A_PAD), lambda i: (i, 0)))

    flops = 2 * B_pad * (state_dim * HIDDEN + 4 * HIDDEN * HIDDEN
                         + HIDDEN * A_PAD)
    transcendentals = B_pad * (A_PAD + 2)               # exp + log + rcp
    bytes_accessed = (x.size * x.dtype.itemsize
                      + sum(p.size * p.dtype.itemsize for p in flat)
                      + 2 * B_pad * A_PAD * 4)

    probs_p, log_probs_p = pl.pallas_call(
        ppo_policy_kernel,
        grid=(n_tiles,),
        in_specs=in_specs,
        out_specs=out_specs,
        out_shape=(jax.ShapeDtypeStruct((B_pad, A_PAD), jnp.float32),
                   jax.ShapeDtypeStruct((B_pad, A_PAD), jnp.float32)),
        compiler_params=pltpu.CompilerParams(
            dimension_semantics=("parallel",),
            vmem_limit_bytes=32 * 1024 * 1024),
        cost_estimate=pl.CostEstimate(flops=flops,
                                      transcendentals=transcendentals,
                                      bytes_accessed=bytes_accessed),
    )(x, *flat)

    return probs_p[:B, :action_dim], log_probs_p[:B, :action_dim]


# --------------------------------------------------------------------------
# Params / reference
# --------------------------------------------------------------------------
def init_params(key, state_dim, action_dim):
    """PyTorch nn.Linear-style init; weights pre-transposed to [in, out]."""
    dims = [(state_dim, HIDDEN)] + [(HIDDEN, HIDDEN)] * 4 + [(HIDDEN, action_dim)]
    params = {}
    for i, (fan_in, fan_out) in enumerate(dims, start=1):
        key, kw, kb = jax.random.split(key, 3)
        bound = 1.0 / jnp.sqrt(jnp.float32(fan_in))
        params[f"w{i}"] = jax.random.uniform(
            kw, (fan_in, fan_out), jnp.float32, -bound, bound)
        params[f"b{i}"] = jax.random.uniform(
            kb, (1, fan_out), jnp.float32, -bound, bound)
    return params


def reference_forward(x, params):
    """Pure-JAX reference using the same bf16-matmul / f32-accumulate recipe."""
    h = x
    for i in range(1, 6):
        w = params[f"w{i}"].astype(jnp.bfloat16)
        acc = jnp.dot(h.astype(jnp.bfloat16), w,
                      preferred_element_type=jnp.float32) + params[f"b{i}"]
        h = jnp.maximum(acc, 0.0)
    w6 = params["w6"].astype(jnp.bfloat16)
    logits = jnp.dot(h.astype(jnp.bfloat16), w6,
                     preferred_element_type=jnp.float32) + params["b6"]
    return jax.nn.softmax(logits, axis=1), jax.nn.log_softmax(logits, axis=1)


# --------------------------------------------------------------------------
# Test
# --------------------------------------------------------------------------
if __name__ == "__main__":
    state_dim, action_dim = 16, 8

    key = jax.random.PRNGKey(0)
    key, kp = jax.random.split(key)
    params = init_params(kp, state_dim, action_dim)

    # (batch, tile_b): toy single-tile case + multi-tile case that exercises
    # the batch grid, weight residency and the padded partial last tile.
    for batch, tile_b in ((4, 256), (300, 128)):
        kx = jax.random.fold_in(key, batch)
        x = jax.random.normal(kx, (batch, state_dim), jnp.float32)

        probs, log_probs = deep_ppo_policy_forward(x, params, tile_b=tile_b)
        jax.block_until_ready((probs, log_probs))

        ref_probs, ref_log_probs = reference_forward(x, params)

        assert probs.shape == (batch, action_dim)
        assert log_probs.shape == (batch, action_dim)
        assert jnp.allclose(probs, ref_probs, atol=2e-5, rtol=2e-5)
        assert jnp.allclose(log_probs, ref_log_probs, atol=1e-4, rtol=1e-4)
        assert jnp.allclose(jnp.sum(probs, axis=1), 1.0, atol=1e-5)

    print("KERNEL_OK")
</pallas_src>

<mosaic_0001>
module attributes {stable_mosaic.version = 11 : i64} {
  func.func @ppo_policy_kernel(%arg0: i32, %arg1: memref<8x16xf32, #tpu.memory_space<vmem>>, %arg2: memref<16x64xbf16, #tpu.memory_space<vmem>>, %arg3: memref<1x64xf32, #tpu.memory_space<vmem>>, %arg4: memref<64x64xbf16, #tpu.memory_space<vmem>>, %arg5: memref<1x64xf32, #tpu.memory_space<vmem>>, %arg6: memref<64x64xbf16, #tpu.memory_space<vmem>>, %arg7: memref<1x64xf32, #tpu.memory_space<vmem>>, %arg8: memref<64x64xbf16, #tpu.memory_space<vmem>>, %arg9: memref<1x64xf32, #tpu.memory_space<vmem>>, %arg10: memref<64x64xbf16, #tpu.memory_space<vmem>>, %arg11: memref<1x64xf32, #tpu.memory_space<vmem>>, %arg12: memref<64x128xbf16, #tpu.memory_space<vmem>>, %arg13: memref<1x128xf32, #tpu.memory_space<vmem>>, %arg14: memref<8x128xf32, #tpu.memory_space<vmem>>, %arg15: memref<8x128xf32, #tpu.memory_space<vmem>>) attributes {dimension_semantics = [#tpu.dimension_semantics<parallel>], iteration_bounds = array<i64: 1>, scalar_prefetch = 0 : i64, scratch_operands = 0 : i64, tpu.core_type = #tpu.core_type<tc>, window_params = [{transform_indices = @transform_0, window_bounds = array<i64: 8, 16>}, {pipeline_mode = #tpu.pipeline_mode<synchronous>, transform_indices = @transform_1, window_bounds = array<i64: 16, 64>}, {pipeline_mode = #tpu.pipeline_mode<synchronous>, transform_indices = @transform_2, window_bounds = array<i64: 1, 64>}, {pipeline_mode = #tpu.pipeline_mode<synchronous>, transform_indices = @transform_3, window_bounds = array<i64: 64, 64>}, {pipeline_mode = #tpu.pipeline_mode<synchronous>, transform_indices = @transform_4, window_bounds = array<i64: 1, 64>}, {pipeline_mode = #tpu.pipeline_mode<synchronous>, transform_indices = @transform_5, window_bounds = array<i64: 64, 64>}, {pipeline_mode = #tpu.pipeline_mode<synchronous>, transform_indices = @transform_6, window_bounds = array<i64: 1, 64>}, {pipeline_mode = #tpu.pipeline_mode<synchronous>, transform_indices = @transform_7, window_bounds = array<i64: 64, 64>}, {pipeline_mode = #tpu.pipeline_mode<synchronous>, transform_indices = @transform_8, window_bounds = array<i64: 1, 64>}, {pipeline_mode = #tpu.pipeline_mode<synchronous>, transform_indices = @transform_9, window_bounds = array<i64: 64, 64>}, {pipeline_mode = #tpu.pipeline_mode<synchronous>, transform_indices = @transform_10, window_bounds = array<i64: 1, 64>}, {pipeline_mode = #tpu.pipeline_mode<synchronous>, transform_indices = @transform_11, window_bounds = array<i64: 64, 128>}, {pipeline_mode = #tpu.pipeline_mode<synchronous>, transform_indices = @transform_12, window_bounds = array<i64: 1, 128>}, {transform_indices = @transform_13, window_bounds = array<i64: 8, 128>}, {transform_indices = @transform_14, window_bounds = array<i64: 8, 128>}]} {
    %c0 = arith.constant 0 : index
    %c0_0 = arith.constant 0 : index
    %0 = vector.load %arg1[%c0, %c0_0] : memref<8x16xf32, #tpu.memory_space<vmem>>, vector<8x16xf32>
    %1 = arith.truncf %0 : vector<8x16xf32> to vector<8x16xbf16>
    %c0_1 = arith.constant 0 : index
    %c0_2 = arith.constant 0 : index
    %2 = vector.load %arg2[%c0_1, %c0_2] : memref<16x64xbf16, #tpu.memory_space<vmem>>, vector<16x64xbf16>
    %cst = arith.constant dense<0.000000e+00> : vector<8x64xf32>
    %3 = tpu.matmul %1, %2, %cst {dimension_numbers = #tpu.dot_dimension_numbers<[1], [0], [0], [1], [0, 0, 1, 1], [], []>} : vector<8x16xbf16>, vector<16x64xbf16>, vector<8x64xf32> -> vector<8x64xf32>
    %c0_3 = arith.constant 0 : index
    %c0_4 = arith.constant 0 : index
    %4 = vector.load %arg3[%c0_3, %c0_4] : memref<1x64xf32, #tpu.memory_space<vmem>>, vector<1x64xf32>
    %5 = vector.broadcast %4 : vector<1x64xf32> to vector<8x64xf32>
    %6 = arith.addf %3, %5 : vector<8x64xf32>
    %cst_5 = arith.constant 0.000000e+00 : f32
    %7 = vector.broadcast %cst_5 : f32 to vector<8x64xf32>
    %8 = arith.maximumf %6, %7 : vector<8x64xf32>
    %9 = arith.truncf %8 : vector<8x64xf32> to vector<8x64xbf16>
    %c0_6 = arith.constant 0 : index
    %c0_7 = arith.constant 0 : index
    %10 = vector.load %arg4[%c0_6, %c0_7] : memref<64x64xbf16, #tpu.memory_space<vmem>>, vector<64x64xbf16>
    %cst_8 = arith.constant dense<0.000000e+00> : vector<8x64xf32>
    %11 = tpu.matmul %9, %10, %cst_8 {dimension_numbers = #tpu.dot_dimension_numbers<[1], [0], [0], [1], [0, 0, 1, 1], [], []>} : vector<8x64xbf16>, vector<64x64xbf16>, vector<8x64xf32> -> vector<8x64xf32>
    %c0_9 = arith.constant 0 : index
    %c0_10 = arith.constant 0 : index
    %12 = vector.load %arg5[%c0_9, %c0_10] : memref<1x64xf32, #tpu.memory_space<vmem>>, vector<1x64xf32>
    %13 = vector.broadcast %12 : vector<1x64xf32> to vector<8x64xf32>
    %14 = arith.addf %11, %13 : vector<8x64xf32>
    %cst_11 = arith.constant 0.000000e+00 : f32
    %15 = vector.broadcast %cst_11 : f32 to vector<8x64xf32>
    %16 = arith.maximumf %14, %15 : vector<8x64xf32>
    %17 = arith.truncf %16 : vector<8x64xf32> to vector<8x64xbf16>
    %c0_12 = arith.constant 0 : index
    %c0_13 = arith.constant 0 : index
    %18 = vector.load %arg6[%c0_12, %c0_13] : memref<64x64xbf16, #tpu.memory_space<vmem>>, vector<64x64xbf16>
    %cst_14 = arith.constant dense<0.000000e+00> : vector<8x64xf32>
    %19 = tpu.matmul %17, %18, %cst_14 {dimension_numbers = #tpu.dot_dimension_numbers<[1], [0], [0], [1], [0, 0, 1, 1], [], []>} : vector<8x64xbf16>, vector<64x64xbf16>, vector<8x64xf32> -> vector<8x64xf32>
    %c0_15 = arith.constant 0 : index
    %c0_16 = arith.constant 0 : index
    %20 = vector.load %arg7[%c0_15, %c0_16] : memref<1x64xf32, #tpu.memory_space<vmem>>, vector<1x64xf32>
    %21 = vector.broadcast %20 : vector<1x64xf32> to vector<8x64xf32>
    %22 = arith.addf %19, %21 : vector<8x64xf32>
    %cst_17 = arith.constant 0.000000e+00 : f32
    %23 = vector.broadcast %cst_17 : f32 to vector<8x64xf32>
    %24 = arith.maximumf %22, %23 : vector<8x64xf32>
    %25 = arith.truncf %24 : vector<8x64xf32> to vector<8x64xbf16>
    %c0_18 = arith.constant 0 : index
    %c0_19 = arith.constant 0 : index
    %26 = vector.load %arg8[%c0_18, %c0_19] : memref<64x64xbf16, #tpu.memory_space<vmem>>, vector<64x64xbf16>
    %cst_20 = arith.constant dense<0.000000e+00> : vector<8x64xf32>
    %27 = tpu.matmul %25, %26, %cst_20 {dimension_numbers = #tpu.dot_dimension_numbers<[1], [0], [0], [1], [0, 0, 1, 1], [], []>} : vector<8x64xbf16>, vector<64x64xbf16>, vector<8x64xf32> -> vector<8x64xf32>
    %c0_21 = arith.constant 0 : index
    %c0_22 = arith.constant 0 : index
    %28 = vector.load %arg9[%c0_21, %c0_22] : memref<1x64xf32, #tpu.memory_space<vmem>>, vector<1x64xf32>
    %29 = vector.broadcast %28 : vector<1x64xf32> to vector<8x64xf32>
    %30 = arith.addf %27, %29 : vector<8x64xf32>
    %cst_23 = arith.constant 0.000000e+00 : f32
    %31 = vector.broadcast %cst_23 : f32 to vector<8x64xf32>
    %32 = arith.maximumf %30, %31 : vector<8x64xf32>
    %33 = arith.truncf %32 : vector<8x64xf32> to vector<8x64xbf16>
    %c0_24 = arith.constant 0 : index
    %c0_25 = arith.constant 0 : index
    %34 = vector.load %arg10[%c0_24, %c0_25] : memref<64x64xbf16, #tpu.memory_space<vmem>>, vector<64x64xbf16>
    %cst_26 = arith.constant dense<0.000000e+00> : vector<8x64xf32>
    %35 = tpu.matmul %33, %34, %cst_26 {dimension_numbers = #tpu.dot_dimension_numbers<[1], [0], [0], [1], [0, 0, 1, 1], [], []>} : vector<8x64xbf16>, vector<64x64xbf16>, vector<8x64xf32> -> vector<8x64xf32>
    %c0_27 = arith.constant 0 : index
    %c0_28 = arith.constant 0 : index
    %36 = vector.load %arg11[%c0_27, %c0_28] : memref<1x64xf32, #tpu.memory_space<vmem>>, vector<1x64xf32>
    %37 = vector.broadcast %36 : vector<1x64xf32> to vector<8x64xf32>
    %38 = arith.addf %35, %37 : vector<8x64xf32>
    %cst_29 = arith.constant 0.000000e+00 : f32
    %39 = vector.broadcast %cst_29 : f32 to vector<8x64xf32>
    %40 = arith.maximumf %38, %39 : vector<8x64xf32>
    %41 = arith.truncf %40 : vector<8x64xf32> to vector<8x64xbf16>
    %c0_30 = arith.constant 0 : index
    %c0_31 = arith.constant 0 : index
    %42 = vector.load %arg12[%c0_30, %c0_31] : memref<64x128xbf16, #tpu.memory_space<vmem>>, vector<64x128xbf16>
    %cst_32 = arith.constant dense<0.000000e+00> : vector<8x128xf32>
    %43 = tpu.matmul %41, %42, %cst_32 {dimension_numbers = #tpu.dot_dimension_numbers<[1], [0], [0], [1], [0, 0, 1, 1], [], []>} : vector<8x64xbf16>, vector<64x128xbf16>, vector<8x128xf32> -> vector<8x128xf32>
    %c0_33 = arith.constant 0 : index
    %c0_34 = arith.constant 0 : index
    %44 = vector.load %arg13[%c0_33, %c0_34] : memref<1x128xf32, #tpu.memory_space<vmem>>, vector<1x128xf32>
    %45 = vector.broadcast %44 : vector<1x128xf32> to vector<8x128xf32>
    %46 = arith.addf %43, %45 : vector<8x128xf32>
    %cst_35 = arith.constant dense<0xFF800000> : vector<8xf32>
    %47 = vector.multi_reduction <maximumf>, %46, %cst_35 [1] : vector<8x128xf32> to vector<8xf32>
    %48 = vector.shape_cast %47 : vector<8xf32> to vector<8x1xf32>
    %49 = vector.broadcast %48 : vector<8x1xf32> to vector<8x128xf32>
    %50 = arith.subf %46, %49 : vector<8x128xf32>
    %51 = math.exp %50 : vector<8x128xf32>
    %cst_36 = arith.constant dense<0.000000e+00> : vector<8xf32>
    %52 = vector.multi_reduction <add>, %51, %cst_36 [1] : vector<8x128xf32> to vector<8xf32>
    %53 = vector.shape_cast %52 : vector<8xf32> to vector<8x1xf32>
    %54 = tpu.reciprocal %53 {approx = true} : vector<8x1xf32> -> vector<8x1xf32>
    %55 = arith.mulf %53, %54 : vector<8x1xf32>
    %cst_37 = arith.constant 2.000000e+00 : f32
    %56 = vector.broadcast %cst_37 : f32 to vector<8x1xf32>
    %57 = arith.subf %56, %55 : vector<8x1xf32>
    %58 = arith.mulf %54, %57 : vector<8x1xf32>
    %59 = arith.mulf %53, %58 : vector<8x1xf32>
    %cst_38 = arith.constant 2.000000e+00 : f32
    %60 = vector.broadcast %cst_38 : f32 to vector<8x1xf32>
    %61 = arith.subf %60, %59 : vector<8x1xf32>
    %62 = arith.mulf %58, %61 : vector<8x1xf32>
    %63 = vector.broadcast %62 : vector<8x1xf32> to vector<8x128xf32>
    %64 = arith.mulf %51, %63 : vector<8x128xf32>
    %c0_39 = arith.constant 0 : index
    %c0_40 = arith.constant 0 : index
    %65 = vector.load %arg14[%c0_39, %c0_40] : memref<8x128xf32, #tpu.memory_space<vmem>>, vector<8x128xf32>
    tpu.vector_store %arg14[%c0_39, %c0_40], %64 {strides = array<i32>} : memref<8x128xf32, #tpu.memory_space<vmem>>, vector<8x128xf32>,
    %66 = math.log %53 : vector<8x1xf32>
    %67 = vector.broadcast %66 : vector<8x1xf32> to vector<8x128xf32>
    %68 = arith.subf %50, %67 : vector<8x128xf32>
    %c0_41 = arith.constant 0 : index
    %c0_42 = arith.constant 0 : index
    %69 = vector.load %arg15[%c0_41, %c0_42] : memref<8x128xf32, #tpu.memory_space<vmem>>, vector<8x128xf32>
    tpu.vector_store %arg15[%c0_41, %c0_42], %68 {strides = array<i32>} : memref<8x128xf32, #tpu.memory_space<vmem>>, vector<8x128xf32>,
    return
  }
  func.func @transform_0(%arg0: i32) -> (i32, i32) {
    %c0_i32 = arith.constant 0 : i32
    %c0_i32_0 = arith.constant 0 : i32
    return %arg0, %c0_i32 : i32, i32
  }
  func.func @transform_1(%arg0: i32) -> (i32, i32) {
    %c0_i32 = arith.constant 0 : i32
    %c0_i32_0 = arith.constant 0 : i32
    %c0_i32_1 = arith.constant 0 : i32
    return %c0_i32, %c0_i32_0 : i32, i32
  }
  func.func @transform_2(%arg0: i32) -> (i32, i32) {
    %c0_i32 = arith.constant 0 : i32
    %c0_i32_0 = arith.constant 0 : i32
    %c0_i32_1 = arith.constant 0 : i32
    return %c0_i32, %c0_i32_0 : i32, i32
  }
  func.func @transform_3(%arg0: i32) -> (i32, i32) {
    %c0_i32 = arith.constant 0 : i32
    %c0_i32_0 = arith.constant 0 : i32
    %c0_i32_1 = arith.constant 0 : i32
    return %c0_i32, %c0_i32_0 : i32, i32
  }
  func.func @transform_4(%arg0: i32) -> (i32, i32) {
    %c0_i32 = arith.constant 0 : i32
    %c0_i32_0 = arith.constant 0 : i32
    %c0_i32_1 = arith.constant 0 : i32
    return %c0_i32, %c0_i32_0 : i32, i32
  }
  func.func @transform_5(%arg0: i32) -> (i32, i32) {
    %c0_i32 = arith.constant 0 : i32
    %c0_i32_0 = arith.constant 0 : i32
    %c0_i32_1 = arith.constant 0 : i32
    return %c0_i32, %c0_i32_0 : i32, i32
  }
  func.func @transform_6(%arg0: i32) -> (i32, i32) {
    %c0_i32 = arith.constant 0 : i32
    %c0_i32_0 = arith.constant 0 : i32
    %c0_i32_1 = arith.constant 0 : i32
    return %c0_i32, %c0_i32_0 : i32, i32
  }
  func.func @transform_7(%arg0: i32) -> (i32, i32) {
    %c0_i32 = arith.constant 0 : i32
    %c0_i32_0 = arith.constant 0 : i32
    %c0_i32_1 = arith.constant 0 : i32
    return %c0_i32, %c0_i32_0 : i32, i32
  }
  func.func @transform_8(%arg0: i32) -> (i32, i32) {
    %c0_i32 = arith.constant 0 : i32
    %c0_i32_0 = arith.constant 0 : i32
    %c0_i32_1 = arith.constant 0 : i32
    return %c0_i32, %c0_i32_0 : i32, i32
  }
  func.func @transform_9(%arg0: i32) -> (i32, i32) {
    %c0_i32 = arith.constant 0 : i32
    %c0_i32_0 = arith.constant 0 : i32
    %c0_i32_1 = arith.constant 0 : i32
    return %c0_i32, %c0_i32_0 : i32, i32
  }
  func.func @transform_10(%arg0: i32) -> (i32, i32) {
    %c0_i32 = arith.constant 0 : i32
    %c0_i32_0 = arith.constant 0 : i32
    %c0_i32_1 = arith.constant 0 : i32
    return %c0_i32, %c0_i32_0 : i32, i32
  }
  func.func @transform_11(%arg0: i32) -> (i32, i32) {
    %c0_i32 = arith.constant 0 : i32
    %c0_i32_0 = arith.constant 0 : i32
    %c0_i32_1 = arith.constant 0 : i32
    return %c0_i32, %c0_i32_0 : i32, i32
  }
  func.func @transform_12(%arg0: i32) -> (i32, i32) {
    %c0_i32 = arith.constant 0 : i32
    %c0_i32_0 = arith.constant 0 : i32
    %c0_i32_1 = arith.constant 0 : i32
    return %c0_i32, %c0_i32_0 : i32, i32
  }
  func.func @transform_13(%arg0: i32) -> (i32, i32) {
    %c0_i32 = arith.constant 0 : i32
    %c0_i32_0 = arith.constant 0 : i32
    return %arg0, %c0_i32 : i32, i32
  }
  func.func @transform_14(%arg0: i32) -> (i32, i32) {
    %c0_i32 = arith.constant 0 : i32
    %c0_i32_0 = arith.constant 0 : i32
    return %arg0, %c0_i32 : i32, i32
  }
}

</mosaic_0001>

<llo_original>
// kernel: deep_ppo_policy_forward.1
$region0: #{deep_ppo_policy_forward.1}
  #allocation0 [shape = 'u32[]', space=smem, size = 0x4, offset = 0x4, fixed_abs, tag = 'smem constant byte address 0x4 - core index']
  #allocation1 [shape = 'u32[144,128]{1,0:T(1,128)}', space=vmem, size = 0x12000, scoped, tag = 'internal scratch']
  %s0 = inlined_call_operand.vmem [shape: f32[8,16], index: 0, kind: input, shape index: {}]
  %s1 = inlined_call_operand.vmem [shape: bf16[16,64], index: 1, kind: input, shape index: {}]
  %s2 = inlined_call_operand.vmem [shape: f32[1,64], index: 2, kind: input, shape index: {}]
  %s3 = inlined_call_operand.vmem [shape: bf16[64,64], index: 3, kind: input, shape index: {}]
  %s4 = inlined_call_operand.vmem [shape: f32[1,64], index: 4, kind: input, shape index: {}]
  %s5 = inlined_call_operand.vmem [shape: bf16[64,64], index: 5, kind: input, shape index: {}]
  %s6 = inlined_call_operand.vmem [shape: f32[1,64], index: 6, kind: input, shape index: {}]
  %s7 = inlined_call_operand.vmem [shape: bf16[64,64], index: 7, kind: input, shape index: {}]
  %s8 = inlined_call_operand.vmem [shape: f32[1,64], index: 8, kind: input, shape index: {}]
  %s9 = inlined_call_operand.vmem [shape: bf16[64,64], index: 9, kind: input, shape index: {}]
  %s10 = inlined_call_operand.vmem [shape: f32[1,64], index: 10, kind: input, shape index: {}]
  %s11 = inlined_call_operand.vmem [shape: bf16[64,128], index: 11, kind: input, shape index: {}]
  %s12 = inlined_call_operand.vmem [shape: f32[1,128], index: 12, kind: input, shape index: {}]
  %s13 = inlined_call_operand.vmem [shape: f32[8,128], index: 13, kind: output, shape index: {0}]
  %s14 = inlined_call_operand.vmem [shape: f32[8,128], index: 14, kind: output, shape index: {1}]
  %15 = xla_tuple %s13, %s14
  %s16 = sld [smem:[#allocation0]]
  $region70: #{deep_ppo_policy_forward.1} parent=0
    _
  %s18 = ssub.s32 1, %s16
  %s19 = scalar_select 0, %s18, %s16
  // Predicated region
  $region2: #{deep_ppo_policy_forward.1} parent=0 // pred_check
    _
  $region3: #{deep_ppo_policy_forward.1} parent=0 // pred_check_branch
    %21 = sbr.rel (0) target = $region5
  $region4: #{deep_ppo_policy_forward.1} parent=0 // pred_region
    _
  $region5: #{deep_ppo_policy_forward.1} parent=0 // pred_fallthru
    _
  // Predicated region
  $region6: #{deep_ppo_policy_forward.1} parent=0 // pred_check
    _
  $region7: #{deep_ppo_policy_forward.1} parent=0 // pred_check_branch
    %23 = sbr.rel (0) target = $region9
  $region8: #{deep_ppo_policy_forward.1} parent=0 // pred_region
    _
  $region9: #{deep_ppo_policy_forward.1} parent=0 // pred_fallthru
    _
  // Predicated region
  $region10: #{deep_ppo_policy_forward.1} parent=0 // pred_check
    _
  $region11: #{deep_ppo_policy_forward.1} parent=0 // pred_check_branch
    %25 = sbr.rel (0) target = $region13
  $region12: #{deep_ppo_policy_forward.1} parent=0 // pred_region
    _
  $region13: #{deep_ppo_policy_forward.1} parent=0 // pred_fallthru
    _
  // Predicated region
  $region14: #{deep_ppo_policy_forward.1} parent=0 // pred_check
    _
  $region15: #{deep_ppo_policy_forward.1} parent=0 // pred_check_branch
    %27 = sbr.rel (0) target = $region17
  $region16: #{deep_ppo_policy_forward.1} parent=0 // pred_region
    _
  $region17: #{deep_ppo_policy_forward.1} parent=0 // pred_fallthru
    _
  // Predicated region
  $region18: #{deep_ppo_policy_forward.1} parent=0 // pred_check
    _
  $region19: #{deep_ppo_policy_forward.1} parent=0 // pred_check_branch
    %29 = sbr.rel (0) target = $region21
  $region20: #{deep_ppo_policy_forward.1} parent=0 // pred_region
    _
  $region21: #{deep_ppo_policy_forward.1} parent=0 // pred_fallthru
    _
  // Predicated region
  $region22: #{deep_ppo_policy_forward.1} parent=0 // pred_check
    _
  $region23: #{deep_ppo_policy_forward.1} parent=0 // pred_check_branch
    %31 = sbr.rel (0) target = $region25
  $region24: #{deep_ppo_policy_forward.1} parent=0 // pred_region
    _
  $region25: #{deep_ppo_policy_forward.1} parent=0 // pred_fallthru
    _
  // Predicated region
  $region26: #{deep_ppo_policy_forward.1} parent=0 // pred_check
    _
  $region27: #{deep_ppo_policy_forward.1} parent=0 // pred_check_branch
    %33 = sbr.rel (0) target = $region29
  $region28: #{deep_ppo_policy_forward.1} parent=0 // pred_region
    _
  $region29: #{deep_ppo_policy_forward.1} parent=0 // pred_fallthru
    _
  // Predicated region
  $region30: #{deep_ppo_policy_forward.1} parent=0 // pred_check
    _
  $region31: #{deep_ppo_policy_forward.1} parent=0 // pred_check_branch
    %35 = sbr.rel (0) target = $region33
  $region32: #{deep_ppo_policy_forward.1} parent=0 // pred_region
    _
  $region33: #{deep_ppo_policy_forward.1} parent=0 // pred_fallthru
    _
  // Predicated region
  $region34: #{deep_ppo_policy_forward.1} parent=0 // pred_check
    _
  $region35: #{deep_ppo_policy_forward.1} parent=0 // pred_check_branch
    %37 = sbr.rel (0) target = $region37
  $region36: #{deep_ppo_policy_forward.1} parent=0 // pred_region
    _
  $region37: #{deep_ppo_policy_forward.1} parent=0 // pred_fallthru
    _
  // Predicated region
  $region38: #{deep_ppo_policy_forward.1} parent=0 // pred_check
    _
  $region39: #{deep_ppo_policy_forward.1} parent=0 // pred_check_branch
    %39 = sbr.rel (0) target = $region41
  $region40: #{deep_ppo_policy_forward.1} parent=0 // pred_region
    _
  $region41: #{deep_ppo_policy_forward.1} parent=0 // pred_fallthru
    _
  // Predicated region
  $region42: #{deep_ppo_policy_forward.1} parent=0 // pred_check
    _
  $region43: #{deep_ppo_policy_forward.1} parent=0 // pred_check_branch
    %41 = sbr.rel (0) target = $region45
  $region44: #{deep_ppo_policy_forward.1} parent=0 // pred_region
    _
  $region45: #{deep_ppo_policy_forward.1} parent=0 // pred_fallthru
    _
  // Predicated region
  $region46: #{deep_ppo_policy_forward.1} parent=0 // pred_check
    _
  $region47: #{deep_ppo_policy_forward.1} parent=0 // pred_check_branch
    %43 = sbr.rel (0) target = $region49
  $region48: #{deep_ppo_policy_forward.1} parent=0 // pred_region
    _
  $region49: #{deep_ppo_policy_forward.1} parent=0 // pred_fallthru
    _
  // Predicated region
  $region50: #{deep_ppo_policy_forward.1} parent=0 // pred_check
    _
  $region51: #{deep_ppo_policy_forward.1} parent=0 // pred_check_branch
    %45 = sbr.rel (0) target = $region53
  $region52: #{deep_ppo_policy_forward.1} parent=0 // pred_region
    _
  $region53: #{deep_ppo_policy_forward.1} parent=0 // pred_fallthru
    _
  %v47 = vld [vmem:[%s0] sm:$0xff]
  %v48 = vpack.c.bf16 %v47, %v47
  %v49 = vld [vmem:[%s1] sm:$0xf]
  %v50 = vld [vmem:[%s1 + $0x4] sm:$0xf]
  %v51 = vld [vmem:[%s2] sm:$0x1]
  %v53 = vlaneseq
  %v54 = vshrl.u32 %v53, 7
  %v55 = vsub.s32 0, %v54
  %v56 = vrot.slane %v51, %v55
  %v60 = vunpack.c.l.b16 %v49
  %v61 = vunpack.c.l.b16 %v50
  %v62 = vpack.c.b16 %v61, %v60
  %vm64 = vcmask 130048
  %v66 = vsel %vm64, %v48, 0
  %68 = vmatprep.subr.bf16.mxu0 0
  %69 = vmatpush1.bf16.msra.mxu0 %v62
  %70 = vmatprep.subr.bf16.mxu0 0
  %71 = vmatpush1.bf16.msra.mxu0 0
  %72 = vmatprep.subr.bf16.mxu0 0
  %73 = vmatpush1.bf16.msra.mxu0 0
  %74 = vmatprep.subr.bf16.mxu0 0
  %75 = vmatpush1.bf16.msra.mxu0 0
  %76 = vmatprep.subr.bf16.mxu0 0
  %77 = vmatpush1.bf16.msra.mxu0 0
  %78 = vmatprep.subr.bf16.mxu0 0
  %79 = vmatpush1.bf16.msra.mxu0 0
  %80 = vmatprep.subr.bf16.mxu0 0
  %81 = vmatpush1.bf16.msra.mxu0 0
  %82 = vmatprep.subr.bf16.mxu0 0
  %83 = vmatpush1.bf16.msra.mxu0 0
  %84 = vmatprep.subr.bf16.mxu0 0
  %85 = vmatpush1.bf16.msra.mxu0 0
  %86 = vmatprep.subr.bf16.mxu0 0
  %87 = vmatpush1.bf16.msra.mxu0 0
  %88 = vmatprep.subr.bf16.mxu0 0
  %89 = vmatpush1.bf16.msra.mxu0 0
  %90 = vmatprep.subr.bf16.mxu0 0
  %91 = vmatpush1.bf16.msra.mxu0 0
  %92 = vmatprep.subr.bf16.mxu0 0
  %93 = vmatpush1.bf16.msra.mxu0 0
  %94 = vmatprep.subr.bf16.mxu0 0
  %95 = vmatpush1.bf16.msra.mxu0 0
  %96 = vmatprep.subr.bf16.mxu0 0
  %97 = vmatpush1.bf16.msra.mxu0 0
  %98 = vmatprep.subr.bf16.mxu0 0
  %99 = vmatpush1.bf16.msra.mxu0 0
  %100 = vmatprep.mubr.bf16.mxu0 0
  %101 = vmatmul.mubr.bf16.gmra.mrb[0].mxu0 %v66
  %v102 = vpop.f32.mrb[0].mxu0
  %v103 = vadd.f32 %v56, %v102
  %v104 = vpop.f32.mrb[0].mxu0
  %v105 = vpop.f32.mrb[0].mxu0
  %v106 = vpop.f32.mrb[0].mxu0
  %107 = vdwg.mxu0
  %v108 = vmax.f32 %v103, 0.0
  %v109 = vpack.c.bf16 %v108, %v108
  %v110 = vld [vmem:[%s3] sm:$0xf]
  %v111 = vld [vmem:[%s3 + $0x4] sm:$0xf]
  %v112 = vld [vmem:[%s3 + $0x8] sm:$0xf]
  %v113 = vld [vmem:[%s3 + $0xc] sm:$0xf]
  %v114 = vld [vmem:[%s3 + $0x10] sm:$0xf]
  %v115 = vld [vmem:[%s3 + $0x14] sm:$0xf]
  %v116 = vld [vmem:[%s3 + $0x18] sm:$0xf]
  %v117 = vld [vmem:[%s3 + $0x1c] sm:$0xf]
  %v118 = vld [vmem:[%s4] sm:$0x1]
  %v120 = vlaneseq
  %v121 = vshrl.u32 %v120, 7
  %v122 = vsub.s32 0, %v121
  %v123 = vrot.slane %v118, %v122
  %v133 = vunpack.c.l.b16 %v110
  %v134 = vunpack.c.l.b16 %v111
  %v135 = vunpack.c.l.b16 %v112
  %v136 = vunpack.c.l.b16 %v113
  %v137 = vunpack.c.l.b16 %v114
  %v138 = vunpack.c.l.b16 %v115
  %v139 = vunpack.c.l.b16 %v116
  %v140 = vunpack.c.l.b16 %v117
  %v141 = vpack.c.b16 %v134, %v133
  %v142 = vpack.c.b16 %v136, %v135
  %v143 = vpack.c.b16 %v138, %v137
  %v144 = vpack.c.b16 %v140, %v139
  %vm149 = vcmask 523264
  %v151 = vsel %vm149, %v109, 0
  %153 = vmatprep.subr.bf16.mxu0 0
  %154 = vmatpush1.bf16.msra.mxu0 %v141
  %155 = vmatprep.subr.bf16.mxu0 0
  %156 = vmatpush1.bf16.msra.mxu0 %v142
  %157 = vmatprep.subr.bf16.mxu0 0
  %158 = vmatpush1.bf16.msra.mxu0 %v143
  %159 = vmatprep.subr.bf16.mxu0 0
  %160 = vmatpush1.bf16.msra.mxu0 %v144
  %161 = vmatprep.subr.bf16.mxu0 0
  %162 = vmatpush1.bf16.msra.mxu0 0
  %163 = vmatprep.subr.bf16.mxu0 0
  %164 = vmatpush1.bf16.msra.mxu0 0
  %165 = vmatprep.subr.bf16.mxu0 0
  %166 = vmatpush1.bf16.msra.mxu0 0
  %167 = vmatprep.subr.bf16.mxu0 0
  %168 = vmatpush1.bf16.msra.mxu0 0
  %169 = vmatprep.subr.bf16.mxu0 0
  %170 = vmatpush1.bf16.msra.mxu0 0
  %171 = vmatprep.subr.bf16.mxu0 0
  %172 = vmatpush1.bf16.msra.mxu0 0
  %173 = vmatprep.subr.bf16.mxu0 0
  %174 = vmatpush1.bf16.msra.mxu0 0
  %175 = vmatprep.subr.bf16.mxu0 0
  %176 = vmatpush1.bf16.msra.mxu0 0
  %177 = vmatprep.subr.bf16.mxu0 0
  %178 = vmatpush1.bf16.msra.mxu0 0
  %179 = vmatprep.subr.bf16.mxu0 0
  %180 = vmatpush1.bf16.msra.mxu0 0
  %181 = vmatprep.subr.bf16.mxu0 0
  %182 = vmatpush1.bf16.msra.mxu0 0
  %183 = vmatprep.subr.bf16.mxu0 0
  %184 = vmatpush1.bf16.msra.mxu0 0
  %185 = vmatprep.mubr.bf16.mxu0 0
  %186 = vmatmul.mubr.bf16.gmra.mrb[0].mxu0 %v151
  %v187 = vpop.f32.mrb[0].mxu0
  %v188 = vadd.f32 %v123, %v187
  %v189 = vpop.f32.mrb[0].mxu0
  %v190 = vpop.f32.mrb[0].mxu0
  %v191 = vpop.f32.mrb[0].mxu0
  %192 = vdwg.mxu0
  %v193 = vmax.f32 %v188, 0.0
  %v194 = vpack.c.bf16 %v193, %v193
  %v195 = vld [vmem:[%s5] sm:$0xf]
  %v196 = vld [vmem:[%s5 + $0x4] sm:$0xf]
  %v197 = vld [vmem:[%s5 + $0x8] sm:$0xf]
  %v198 = vld [vmem:[%s5 + $0xc] sm:$0xf]
  %v199 = vld [vmem:[%s5 + $0x10] sm:$0xf]
  %v200 = vld [vmem:[%s5 + $0x14] sm:$0xf]
  %v201 = vld [vmem:[%s5 + $0x18] sm:$0xf]
  %v202 = vld [vmem:[%s5 + $0x1c] sm:$0xf]
  %v203 = vld [vmem:[%s6] sm:$0x1]
  %v205 = vlaneseq
  %v206 = vshrl.u32 %v205, 7
  %v207 = vsub.s32 0, %v206
  %v208 = vrot.slane %v203, %v207
  %v218 = vunpack.c.l.b16 %v195
  %v219 = vunpack.c.l.b16 %v196
  %v220 = vunpack.c.l.b16 %v197
  %v221 = vunpack.c.l.b16 %v198
  %v222 = vunpack.c.l.b16 %v199
  %v223 = vunpack.c.l.b16 %v200
  %v224 = vunpack.c.l.b16 %v201
  %v225 = vunpack.c.l.b16 %v202
  %v226 = vpack.c.b16 %v219, %v218
  %v227 = vpack.c.b16 %v221, %v220
  %v228 = vpack.c.b16 %v223, %v222
  %v229 = vpack.c.b16 %v225, %v224
  %v235 = vsel %vm149, %v194, 0
  %237 = vmatprep.subr.bf16.mxu0 0
  %238 = vmatpush1.bf16.msra.mxu0 %v226
  %239 = vmatprep.subr.bf16.mxu0 0
  %240 = vmatpush1.bf16.msra.mxu0 %v227
  %241 = vmatprep.subr.bf16.mxu0 0
  %242 = vmatpush1.bf16.msra.mxu0 %v228
  %243 = vmatprep.subr.bf16.mxu0 0
  %244 = vmatpush1.bf16.msra.mxu0 %v229
  %245 = vmatprep.subr.bf16.mxu0 0
  %246 = vmatpush1.bf16.msra.mxu0 0
  %247 = vmatprep.subr.bf16.mxu0 0
  %248 = vmatpush1.bf16.msra.mxu0 0
  %249 = vmatprep.subr.bf16.mxu0 0
  %250 = vmatpush1.bf16.msra.mxu0 0
  %251 = vmatprep.subr.bf16.mxu0 0
  %252 = vmatpush1.bf16.msra.mxu0 0
  %253 = vmatprep.subr.bf16.mxu0 0
  %254 = vmatpush1.bf16.msra.mxu0 0
  %255 = vmatprep.subr.bf16.mxu0 0
  %256 = vmatpush1.bf16.msra.mxu0 0
  %257 = vmatprep.subr.bf16.mxu0 0
  %258 = vmatpush1.bf16.msra.mxu0 0
  %259 = vmatprep.subr.bf16.mxu0 0
  %260 = vmatpush1.bf16.msra.mxu0 0
  %261 = vmatprep.subr.bf16.mxu0 0
  %262 = vmatpush1.bf16.msra.mxu0 0
  %263 = vmatprep.subr.bf16.mxu0 0
  %264 = vmatpush1.bf16.msra.mxu0 0
  %265 = vmatprep.subr.bf16.mxu0 0
  %266 = vmatpush1.bf16.msra.mxu0 0
  %267 = vmatprep.subr.bf16.mxu0 0
  %268 = vmatpush1.bf16.msra.mxu0 0
  %269 = vmatprep.mubr.bf16.mxu0 0
  %270 = vmatmul.mubr.bf16.gmra.mrb[0].mxu0 %v235
  %v271 = vpop.f32.mrb[0].mxu0
  %v272 = vadd.f32 %v208, %v271
  %v273 = vpop.f32.mrb[0].mxu0
  %v274 = vpop.f32.mrb[0].mxu0
  %v275 = vpop.f32.mrb[0].mxu0
  %276 = vdwg.mxu0
  %v277 = vmax.f32 %v272, 0.0
  %v278 = vpack.c.bf16 %v277, %v277
  %v279 = vld [vmem:[%s7] sm:$0xf]
  %v280 = vld [vmem:[%s7 + $0x4] sm:$0xf]
  %v281 = vld [vmem:[%s7 + $0x8] sm:$0xf]
  %v282 = vld [vmem:[%s7 + $0xc] sm:$0xf]
  %v283 = vld [vmem:[%s7 + $0x10] sm:$0xf]
  %v284 = vld [vmem:[%s7 + $0x14] sm:$0xf]
  %v285 = vld [vmem:[%s7 + $0x18] sm:$0xf]
  %v286 = vld [vmem:[%s7 + $0x1c] sm:$0xf]
  %v287 = vld [vmem:[%s8] sm:$0x1]
  %v289 = vlaneseq
  %v290 = vshrl.u32 %v289, 7
  %v291 = vsub.s32 0, %v290
  %v292 = vrot.slane %v287, %v291
  %v302 = vunpack.c.l.b16 %v279
  %v303 = vunpack.c.l.b16 %v280
  %v304 = vunpack.c.l.b16 %v281
  %v305 = vunpack.c.l.b16 %v282
  %v306 = vunpack.c.l.b16 %v283
  %v307 = vunpack.c.l.b16 %v284
  %v308 = vunpack.c.l.b16 %v285
  %v309 = vunpack.c.l.b16 %v286
  %v310 = vpack.c.b16 %v303, %v302
  %v311 = vpack.c.b16 %v305, %v304
  %v312 = vpack.c.b16 %v307, %v306
  %v313 = vpack.c.b16 %v309, %v308
  %v319 = vsel %vm149, %v278, 0
  %321 = vmatprep.subr.bf16.mxu0 0
  %322 = vmatpush1.bf16.msra.mxu0 %v310
  %323 = vmatprep.subr.bf16.mxu0 0
  %324 = vmatpush1.bf16.msra.mxu0 %v311
  %325 = vmatprep.subr.bf16.mxu0 0
  %326 = vmatpush1.bf16.msra.mxu0 %v312
  %327 = vmatprep.subr.bf16.mxu0 0
  %328 = vmatpush1.bf16.msra.mxu0 %v313
  %329 = vmatprep.subr.bf16.mxu0 0
  %330 = vmatpush1.bf16.msra.mxu0 0
  %331 = vmatprep.subr.bf16.mxu0 0
  %332 = vmatpush1.bf16.msra.mxu0 0
  %333 = vmatprep.subr.bf16.mxu0 0
  %334 = vmatpush1.bf16.msra.mxu0 0
  %335 = vmatprep.subr.bf16.mxu0 0
  %336 = vmatpush1.bf16.msra.mxu0 0
  %337 = vmatprep.subr.bf16.mxu0 0
  %338 = vmatpush1.bf16.msra.mxu0 0
  %339 = vmatprep.subr.bf16.mxu0 0
  %340 = vmatpush1.bf16.msra.mxu0 0
  %341 = vmatprep.subr.bf16.mxu0 0
  %342 = vmatpush1.bf16.msra.mxu0 0
  %343 = vmatprep.subr.bf16.mxu0 0
  %344 = vmatpush1.bf16.msra.mxu0 0
  %345 = vmatprep.subr.bf16.mxu0 0
  %346 = vmatpush1.bf16.msra.mxu0 0
  %347 = vmatprep.subr.bf16.mxu0 0
  %348 = vmatpush1.bf16.msra.mxu0 0
  %349 = vmatprep.subr.bf16.mxu0 0
  %350 = vmatpush1.bf16.msra.mxu0 0
  %351 = vmatprep.subr.bf16.mxu0 0
  %352 = vmatpush1.bf16.msra.mxu0 0
  %353 = vmatprep.mubr.bf16.mxu0 0
  %354 = vmatmul.mubr.bf16.gmra.mrb[0].mxu0 %v319
  %v355 = vpop.f32.mrb[0].mxu0
  %v356 = vadd.f32 %v292, %v355
  %v357 = vpop.f32.mrb[0].mxu0
  %v358 = vpop.f32.mrb[0].mxu0
  %v359 = vpop.f32.mrb[0].mxu0
  %360 = vdwg.mxu0
  %v361 = vmax.f32 %v356, 0.0
  %v362 = vpack.c.bf16 %v361, %v361
  %v363 = vld [vmem:[%s9] sm:$0xf]
  %v364 = vld [vmem:[%s9 + $0x4] sm:$0xf]
  %v365 = vld [vmem:[%s9 + $0x8] sm:$0xf]
  %v366 = vld [vmem:[%s9 + $0xc] sm:$0xf]
  %v367 = vld [vmem:[%s9 + $0x10] sm:$0xf]
  %v368 = vld [vmem:[%s9 + $0x14] sm:$0xf]
  %v369 = vld [vmem:[%s9 + $0x18] sm:$0xf]
  %v370 = vld [vmem:[%s9 + $0x1c] sm:$0xf]
  %v371 = vld [vmem:[%s10] sm:$0x1]
  %v373 = vlaneseq
  %v374 = vshrl.u32 %v373, 7
  %v375 = vsub.s32 0, %v374
  %v376 = vrot.slane %v371, %v375
  %v386 = vunpack.c.l.b16 %v363
  %v387 = vunpack.c.l.b16 %v364
  %v388 = vunpack.c.l.b16 %v365
  %v389 = vunpack.c.l.b16 %v366
  %v390 = vunpack.c.l.b16 %v367
  %v391 = vunpack.c.l.b16 %v368
  %v392 = vunpack.c.l.b16 %v369
  %v393 = vunpack.c.l.b16 %v370
  %v394 = vpack.c.b16 %v387, %v386
  %v395 = vpack.c.b16 %v389, %v388
  %v396 = vpack.c.b16 %v391, %v390
  %v397 = vpack.c.b16 %v393, %v392
  %v403 = vsel %vm149, %v362, 0
  %405 = vmatprep.subr.bf16.mxu0 0
  %406 = vmatpush1.bf16.msra.mxu0 %v394
  %407 = vmatprep.subr.bf16.mxu0 0
  %408 = vmatpush1.bf16.msra.mxu0 %v395
  %409 = vmatprep.subr.bf16.mxu0 0
  %410 = vmatpush1.bf16.msra.mxu0 %v396
  %411 = vmatprep.subr.bf16.mxu0 0
  %412 = vmatpush1.bf16.msra.mxu0 %v397
  %413 = vmatprep.subr.bf16.mxu0 0
  %414 = vmatpush1.bf16.msra.mxu0 0
  %415 = vmatprep.subr.bf16.mxu0 0
  %416 = vmatpush1.bf16.msra.mxu0 0
  %417 = vmatprep.subr.bf16.mxu0 0
  %418 = vmatpush1.bf16.msra.mxu0 0
  %419 = vmatprep.subr.bf16.mxu0 0
  %420 = vmatpush1.bf16.msra.mxu0 0
  %421 = vmatprep.subr.bf16.mxu0 0
  %422 = vmatpush1.bf16.msra.mxu0 0
  %423 = vmatprep.subr.bf16.mxu0 0
  %424 = vmatpush1.bf16.msra.mxu0 0
  %425 = vmatprep.subr.bf16.mxu0 0
  %426 = vmatpush1.bf16.msra.mxu0 0
  %427 = vmatprep.subr.bf16.mxu0 0
  %428 = vmatpush1.bf16.msra.mxu0 0
  %429 = vmatprep.subr.bf16.mxu0 0
  %430 = vmatpush1.bf16.msra.mxu0 0
  %431 = vmatprep.subr.bf16.mxu0 0
  %432 = vmatpush1.bf16.msra.mxu0 0
  %433 = vmatprep.subr.bf16.mxu0 0
  %434 = vmatpush1.bf16.msra.mxu0 0
  %435 = vmatprep.subr.bf16.mxu0 0
  %436 = vmatpush1.bf16.msra.mxu0 0
  %437 = vmatprep.mubr.bf16.mxu0 0
  %438 = vmatmul.mubr.bf16.gmra.mrb[0].mxu0 %v403
  %v439 = vpop.f32.mrb[0].mxu0
  %v440 = vadd.f32 %v376, %v439
  %v441 = vpop.f32.mrb[0].mxu0
  %v442 = vpop.f32.mrb[0].mxu0
  %v443 = vpop.f32.mrb[0].mxu0
  %444 = vdwg.mxu0
  %v445 = vmax.f32 %v440, 0.0
  %v446 = vpack.c.bf16 %v445, %v445
  %v447 = vld [vmem:[%s11] sm:$0xf]
  %v448 = vld [vmem:[%s11 + $0x4] sm:$0xf]
  %v449 = vld [vmem:[%s11 + $0x8] sm:$0xf]
  %v450 = vld [vmem:[%s11 + $0xc] sm:$0xf]
  %v451 = vld [vmem:[%s11 + $0x10] sm:$0xf]
  %v452 = vld [vmem:[%s11 + $0x14] sm:$0xf]
  %v453 = vld [vmem:[%s11 + $0x18] sm:$0xf]
  %v454 = vld [vmem:[%s11 + $0x1c] sm:$0xf]
  %v455 = vld [vmem:[%s12] sm:$0x1]
  %v457 = vlaneseq
  %v458 = vshrl.u32 %v457, 7
  %v459 = vsub.s32 0, %v458
  %v460 = vrot.slane %v455, %v459
  %v470 = vunpack.c.l.b16 %v447
  %v471 = vunpack.c.l.b16 %v448
  %v472 = vunpack.c.l.b16 %v449
  %v473 = vunpack.c.l.b16 %v450
  %v474 = vunpack.c.l.b16 %v451
  %v475 = vunpack.c.l.b16 %v452
  %v476 = vunpack.c.l.b16 %v453
  %v477 = vunpack.c.l.b16 %v454
  %v478 = vpack.c.b16 %v471, %v470
  %v479 = vpack.c.b16 %v473, %v472
  %v480 = vpack.c.b16 %v475, %v474
  %v481 = vpack.c.b16 %v477, %v476
  %v487 = vsel %vm149, %v446, 0
  %489 = vmatprep.subr.bf16.mxu0 0
  %490 = vmatpush1.bf16.msra.mxu0 %v478
  %491 = vmatprep.subr.bf16.mxu0 0
  %492 = vmatpush1.bf16.msra.mxu0 %v479
  %493 = vmatprep.subr.bf16.mxu0 0
  %494 = vmatpush1.bf16.msra.mxu0 %v480
  %495 = vmatprep.subr.bf16.mxu0 0
  %496 = vmatpush1.bf16.msra.mxu0 %v481
  %497 = vmatprep.subr.bf16.mxu0 0
  %498 = vmatpush1.bf16.msra.mxu0 0
  %499 = vmatprep.subr.bf16.mxu0 0
  %500 = vmatpush1.bf16.msra.mxu0 0
  %501 = vmatprep.subr.bf16.mxu0 0
  %502 = vmatpush1.bf16.msra.mxu0 0
  %503 = vmatprep.subr.bf16.mxu0 0
  %504 = vmatpush1.bf16.msra.mxu0 0
  %505 = vmatprep.subr.bf16.mxu0 0
  %506 = vmatpush1.bf16.msra.mxu0 0
  %507 = vmatprep.subr.bf16.mxu0 0
  %508 = vmatpush1.bf16.msra.mxu0 0
  %509 = vmatprep.subr.bf16.mxu0 0
  %510 = vmatpush1.bf16.msra.mxu0 0
  %511 = vmatprep.subr.bf16.mxu0 0
  %512 = vmatpush1.bf16.msra.mxu0 0
  %513 = vmatprep.subr.bf16.mxu0 0
  %514 = vmatpush1.bf16.msra.mxu0 0
  %515 = vmatprep.subr.bf16.mxu0 0
  %516 = vmatpush1.bf16.msra.mxu0 0
  %517 = vmatprep.subr.bf16.mxu0 0
  %518 = vmatpush1.bf16.msra.mxu0 0
  %519 = vmatprep.subr.bf16.mxu0 0
  %520 = vmatpush1.bf16.msra.mxu0 0
  %521 = vmatprep.mubr.bf16.mxu0 0
  %522 = vmatmul.mubr.bf16.gmra.mrb[0].mxu0 %v487
  %v523 = vpop.f32.mrb[0].mxu0
  %v524 = vadd.f32 %v460, %v523
  %v525 = vpop.f32.mrb[0].mxu0
  %v526 = vpop.f32.mrb[0].mxu0
  %v527 = vpop.f32.mrb[0].mxu0
  %528 = vdwg.mxu0
  %529 = vmax.xlane.f32.xlu0 %v524
  %v530 = vpop.xlane.xlu0 %529
  %v531 = vsub.f32 %v524, %v530
  %v532 = vmul.f32 %v531, 1.442695
  %v533 = vpow.pop %v532
  %534 = vadd.xlane.f32.xlu0 %v533
  %v535 = vpop.xlane.xlu0 %534
  %v536 = vrcp.pop %v535
  %v537 = vmul.f32 %v535, %v536
  %v538 = vsub.f32 2.0, %v537
  %v539 = vmul.f32 %v536, %v538
  %v540 = vmul.f32 %v535, %v539
  %v541 = vsub.f32 2.0, %v540
  %v542 = vmul.f32 %v539, %v541
  %v543 = vmul.f32 %v533, %v542
  %544 = vst [vmem:[%s13] sm:$0xff] %v543
  %v545 = vlog2.pop %v535
  %v546 = vmul.f32 %v545, 0.6931472
  %v547 = vsub.f32 %v531, %v546
  %548 = vst [vmem:[%s14] sm:$0xff] %v547
  // Predicated region
  $region54: #{deep_ppo_policy_forward.1} parent=0 // pred_check
    _
  $region55: #{deep_ppo_policy_forward.1} parent=0 // pred_check_branch
    %550 = sbr.rel (0) target = $region57
  $region56: #{deep_ppo_policy_forward.1} parent=0 // pred_region
    _
  $region57: #{deep_ppo_policy_forward.1} parent=0 // pred_fallthru
    _
  // Predicated region
  $region58: #{deep_ppo_policy_forward.1} parent=0 // pred_check
    _
  $region59: #{deep_ppo_policy_forward.1} parent=0 // pred_check_branch
    %552 = sbr.rel (0) target = $region61
  $region60: #{deep_ppo_policy_forward.1} parent=0 // pred_region
    _
  $region61: #{deep_ppo_policy_forward.1} parent=0 // pred_fallthru
    _
  // Predicated region
  $region62: #{deep_ppo_policy_forward.1} parent=0 // pred_check
    _
  $region63: #{deep_ppo_policy_forward.1} parent=0 // pred_check_branch
    %554 = sbr.rel (0) target = $region65
  $region64: #{deep_ppo_policy_forward.1} parent=0 // pred_region
    _
  $region65: #{deep_ppo_policy_forward.1} parent=0 // pred_fallthru
    _
  // Predicated region
  $region66: #{deep_ppo_policy_forward.1} parent=0 // pred_check
    _
  $region67: #{deep_ppo_policy_forward.1} parent=0 // pred_check_branch
    %556 = sbr.rel (0) target = $region69
  $region68: #{deep_ppo_policy_forward.1} parent=0 // pred_region
    _
  $region69: #{deep_ppo_policy_forward.1} parent=0 // pred_fallthru
    _

</llo_original>
